<compile_context>
chip_gen: v6e
topology: v6e:2x2x1
jax: 0.10.0
libtpu: 0.0.40
codegen_flags: <defaults>
</compile_context>

<pallas_src>
import functools
import math

import jax
import jax.numpy as jnp
from jax.experimental import pallas as pl
from jax.experimental.pallas import tpu as pltpu


def _pe_dropout_kernel(seed_ref, x_ref, pe_ref, o_ref, *, p, deterministic,
                       block_rows):
    # x_ref: (TS, batch, d_model) ; pe_ref: (TS, 1, d_model)
    y = x_ref[...] + pe_ref[...]          # broadcast add over batch

    if deterministic or p == 0.0:
        o_ref[...] = y.astype(o_ref.dtype)
        return

    ts, b, d = x_ref.shape
    # Global element index -> hash -> uniform 32-bit value.  Independent per
    # grid block (index includes the global row) and tiling-invariant.
    row = jax.lax.broadcasted_iota(jnp.uint32, (ts, b, d), 0)
    bat = jax.lax.broadcasted_iota(jnp.uint32, (ts, b, d), 1)
    lan = jax.lax.broadcasted_iota(jnp.uint32, (ts, b, d), 2)
    base = (pl.program_id(0) * block_rows).astype(jnp.uint32)
    lin = ((base + row) * jnp.uint32(b) + bat) * jnp.uint32(d) + lan

    h = lin ^ (seed_ref[0].astype(jnp.uint32) * jnp.uint32(0x9E3779B9))
    # murmur3-style finalizer (good avalanche, pure VPU integer ops)
    h = h ^ (h >> 16)
    h = h * jnp.uint32(0x7FEB352D)
    h = h ^ (h >> 15)
    h = h * jnp.uint32(0x846CA68B)
    h = h ^ (h >> 16)

    # keep iff hash >= p * 2^32  (integer threshold; no float convert needed)
    thr = jnp.uint32(min(int(p * 4294967296.0), 4294967295))
    keep = h >= thr
    scale = jnp.asarray(1.0 / (1.0 - p), dtype=y.dtype)
    o_ref[...] = jnp.where(keep, y * scale, jnp.zeros_like(y)).astype(o_ref.dtype)


def _choose_block_rows(seq_len, batch, d_model, itemsize,
                       target_bytes=4 * 1024 * 1024):
    """Pick a seq-tile so each x block is ~4 MiB (sublane-rounded)."""
    rows = target_bytes // max(1, batch * d_model * itemsize)
    if rows >= seq_len:
        return seq_len
    rows = max(8, (rows // 8) * 8)
    return int(min(rows, seq_len))


def positional_encoding_forward(x, pe, *, seed=0, p=0.1, deterministic=False,
                                block_rows=None):
    """x: [seq_len, batch, d_model]; pe: [max_len, 1, d_model]."""
    seq_len, batch, d_model = x.shape
    pe_slice = pe[:seq_len].astype(x.dtype)   # static slice + dtype match (glue)

    if block_rows is None:
        block_rows = _choose_block_rows(seq_len, batch, d_model,
                                        jnp.dtype(x.dtype).itemsize)
    block_rows = int(min(block_rows, seq_len))
    grid = (pl.cdiv(seq_len, block_rows),)

    kernel = functools.partial(
        _pe_dropout_kernel, p=p, deterministic=deterministic,
        block_rows=block_rows)

    return pl.pallas_call(
        kernel,
        grid=grid,
        out_shape=jax.ShapeDtypeStruct(x.shape, x.dtype),
        in_specs=[
            # seed scalar lives whole in SMEM (replicated across grid steps)
            pl.BlockSpec(memory_space=pltpu.MemorySpace.SMEM),
            # x tiled along seq; batch/d_model kept whole inside a block
            pl.BlockSpec((block_rows, batch, d_model), lambda i: (i, 0, 0)),
            # pe tiled along seq; broadcasts over batch inside the kernel
            pl.BlockSpec((block_rows, 1, d_model), lambda i: (i, 0, 0)),
        ],
        out_specs=pl.BlockSpec((block_rows, batch, d_model),
                               lambda i: (i, 0, 0)),
        compiler_params=pltpu.CompilerParams(
            dimension_semantics=("parallel",),      # shard grid over TCs (v7x)
            vmem_limit_bytes=48 * 1024 * 1024,      # safe on v5e/v6e/v7x
        ),
    )(jnp.asarray([seed], jnp.int32), x, pe_slice)


def make_positional_encoding_buffer(d_model, max_len, dtype=jnp.float32):
    """Deterministic buffer setup matching the PyTorch __init__."""
    position = jnp.arange(max_len, dtype=jnp.float32)[:, None]            # (max_len, 1)
    div_term = jnp.exp(
        jnp.arange(0, d_model, 2, dtype=jnp.float32)
        * (-math.log(10000.0) / d_model)
    )                                                                      # (d_model//2,)
    pe = jnp.zeros((max_len, 1, d_model), dtype=jnp.float32)
    pe = pe.at[:, 0, 0::2].set(jnp.sin(position * div_term))
    pe = pe.at[:, 0, 1::2].set(jnp.cos(position * div_term))
    return pe.astype(dtype)


if __name__ == "__main__":
    seq_len, batch, d_model, max_len = 8, 2, 32, 64
    p_dropout = 0.1

    key = jax.random.PRNGKey(0)
    x = jax.random.normal(key, (seq_len, batch, d_model), dtype=jnp.float32)
    pe = make_positional_encoding_buffer(d_model, max_len)
    ref = x + pe[:seq_len]

    # Eval-mode (deterministic) path: exact semantics of x + pe[:seq_len]
    y_eval = positional_encoding_forward(x, pe, p=p_dropout, deterministic=True)
    y_eval = jax.block_until_ready(y_eval)
    assert jnp.allclose(y_eval, ref, atol=1e-6), "mismatch vs reference (single block)"

    # Same check with a smaller tile to exercise the multi-block grid path.
    y_eval2 = positional_encoding_forward(x, pe, p=p_dropout,
                                          deterministic=True, block_rows=4)
    y_eval2 = jax.block_until_ready(y_eval2)
    assert jnp.allclose(y_eval2, ref, atol=1e-6), "mismatch vs reference (tiled grid)"

    # Train-mode path: on-the-fly counter-hash dropout mask.
    y_train = positional_encoding_forward(x, pe, seed=123, p=p_dropout,
                                          deterministic=False)
    y_train = jax.block_until_ready(y_train)
    assert y_train.shape == x.shape and y_train.dtype == x.dtype
    # Kept elements must equal ref / (1 - p); dropped elements are exactly 0.
    scaled = ref / (1.0 - p_dropout)
    ok = (jnp.abs(y_train - scaled) < 1e-5) | (y_train == 0.0)
    assert bool(jnp.all(ok)), "dropout output is neither kept-scaled nor zero"

    print("KERNEL_OK")
</pallas_src>

<mosaic_0001>
module attributes {stable_mosaic.version = 11 : i64} {
  func.func @_pe_dropout_kernel(%arg0: i32, %arg1: memref<1xi32, #tpu.memory_space<smem>>, %arg2: memref<8x2x32xf32, #tpu.memory_space<vmem>>, %arg3: memref<8x1x32xf32, #tpu.memory_space<vmem>>, %arg4: memref<8x2x32xf32, #tpu.memory_space<vmem>>) attributes {dimension_semantics = [#tpu.dimension_semantics<parallel>], iteration_bounds = array<i64: 1>, scalar_prefetch = 0 : i64, scratch_operands = 0 : i64, tpu.core_type = #tpu.core_type<tc>, window_params = [{transform_indices = @transform_0, window_bounds = array<i64: 1>}, {transform_indices = @transform_1, window_bounds = array<i64: 8, 2, 32>}, {transform_indices = @transform_2, window_bounds = array<i64: 8, 1, 32>}, {transform_indices = @transform_3, window_bounds = array<i64: 8, 2, 32>}]} {
    %c0 = arith.constant 0 : index
    %c0_0 = arith.constant 0 : index
    %c0_1 = arith.constant 0 : index
    %0 = vector.load %arg2[%c0, %c0_0, %c0_1] : memref<8x2x32xf32, #tpu.memory_space<vmem>>, vector<8x2x32xf32>
    %c0_2 = arith.constant 0 : index
    %c0_3 = arith.constant 0 : index
    %c0_4 = arith.constant 0 : index
    %1 = vector.load %arg3[%c0_2, %c0_3, %c0_4] : memref<8x1x32xf32, #tpu.memory_space<vmem>>, vector<8x1x32xf32>
    %2 = vector.broadcast %1 : vector<8x1x32xf32> to vector<8x2x32xf32>
    %3 = arith.addf %0, %2 : vector<8x2x32xf32>
    %c0_5 = arith.constant 0 : index
    %c0_6 = arith.constant 0 : index
    %c0_7 = arith.constant 0 : index
    %4 = vector.load %arg4[%c0_5, %c0_6, %c0_7] : memref<8x2x32xf32, #tpu.memory_space<vmem>>, vector<8x2x32xf32>
    tpu.vector_store %arg4[%c0_5, %c0_6, %c0_7], %3 {strides = array<i32>} : memref<8x2x32xf32, #tpu.memory_space<vmem>>, vector<8x2x32xf32>,
    return
  }
  func.func @transform_0(%arg0: i32) -> i32 {
    %c0_i32 = arith.constant 0 : i32
    %c0_i32_0 = arith.constant 0 : i32
    return %c0_i32 : i32
  }
  func.func @transform_1(%arg0: i32) -> (i32, i32, i32) {
    %c0_i32 = arith.constant 0 : i32
    %c0_i32_0 = arith.constant 0 : i32
    %c0_i32_1 = arith.constant 0 : i32
    return %arg0, %c0_i32, %c0_i32_0 : i32, i32, i32
  }
  func.func @transform_2(%arg0: i32) -> (i32, i32, i32) {
    %c0_i32 = arith.constant 0 : i32
    %c0_i32_0 = arith.constant 0 : i32
    %c0_i32_1 = arith.constant 0 : i32
    return %arg0, %c0_i32, %c0_i32_0 : i32, i32, i32
  }
  func.func @transform_3(%arg0: i32) -> (i32, i32, i32) {
    %c0_i32 = arith.constant 0 : i32
    %c0_i32_0 = arith.constant 0 : i32
    %c0_i32_1 = arith.constant 0 : i32
    return %arg0, %c0_i32, %c0_i32_0 : i32, i32, i32
  }
}

</mosaic_0001>

<llo_original>
// kernel: tpu_custom_call.1
$region0: #{tpu_custom_call.1}
  #allocation0 [shape = 'u32[]', space=smem, size = 0x4, offset = 0x4, fixed_abs, tag = 'smem constant byte address 0x4 - core index']
  #allocation1 [shape = 'u32[144,128]{1,0:T(1,128)}', space=vmem, size = 0x12000, scoped, tag = 'internal scratch']
  #allocation2 [shape = 's32[1]{0:T(128)S(6)}', space=smem, size = 0x200, scoped, tag = 'scoped memory for tpu_custom_call.1']
  %s0 = inlined_call_operand.<no memory space> [shape: s32[1], index: 0, kind: input, shape index: {}]
  %s1 = inlined_call_operand.hbm [shape: f32[8,2,32], index: 1, kind: input, shape index: {}]
  %s2 = inlined_call_operand.hbm [shape: f32[8,1,32], index: 2, kind: input, shape index: {}]
  %s3 = inlined_call_operand.hbm [shape: f32[8,2,32], index: 3, kind: output, shape index: {}]
  %s4 = sld [smem:[#allocation0]]
  $region30: #{tpu_custom_call.1} parent=0
    _
  %s6 = ssub.s32 1, %s4
  %s7 = scalar_select 0, %s6, %s4
  %8 = sst [smem:[#allocation2]] %s0
  $region1: #{tpu_custom_call.1} parent=0
    #allocation3 [shape = 'u8[8192]{0}', space=vmem, size = 0x2000, scoped, tag = 'input window, operand 1, single buffered']
    #allocation4 [shape = 's32[1]{0}', space=sflag, size = 0x4, scoped, tag = 'scoped memory for tpu_custom_call.1']
    #allocation5 [shape = 's32[1]{0}', space=sflag, size = 0x4, scoped, tag = 'scoped memory for tpu_custom_call.1']
    #allocation6 [shape = 'u8[4096]{0}', space=vmem, size = 0x1000, scoped, tag = 'input window, operand 2, single buffered']
    #allocation7 [shape = 's32[1]{0}', space=sflag, size = 0x4, scoped, tag = 'scoped memory for tpu_custom_call.1']
    #allocation8 [shape = 'u8[8192]{0}', space=vmem, size = 0x2000, scoped, tag = 'output window, operand 0, single buffered']
    %9 = vsyncpa [#allocation4], 0
    %10 = vsyncpa [#allocation7], 0
    %11 = vsyncpa [#allocation5], 0
    // Predicated region
    $region2: #{tpu_custom_call.1} parent=1 // pred_check
      _
    $region3: #{tpu_custom_call.1} parent=1 // pred_check_branch
      %13 = sbr.rel (0) target = $region5
    $region4: #{tpu_custom_call.1} parent=1 // pred_region
      _
    $region5: #{tpu_custom_call.1} parent=1 // pred_fallthru
      _
    // Predicated region
    $region6: #{tpu_custom_call.1} parent=1 // pred_check
      _
    $region7: #{tpu_custom_call.1} parent=1 // pred_check_branch
      %15 = sbr.rel (0) target = $region9
    $region8: #{tpu_custom_call.1} parent=1 // pred_region
      %s17 = ssub.s32 256, 256
      %18 = vsyncadd [#allocation4], %s17
      %s19 = sshll.u32 [#allocation3], 4
      %s20 = int_to_ptr.vmem [resolvable:$true] %s19
      %25 = dma.hbm_to_vmem [thread:$0]  %s1, 256, %s20, [#allocation4], 32, 32, 2
    $region9: #{tpu_custom_call.1} parent=1 // pred_fallthru
      _
    // Predicated region
    $region10: #{tpu_custom_call.1} parent=1 // pred_check
      _
    $region11: #{tpu_custom_call.1} parent=1 // pred_check_branch
      %27 = sbr.rel (0) target = $region13
    $region12: #{tpu_custom_call.1} parent=1 // pred_region
      %s29 = ssub.s32 128, 128
      %30 = vsyncadd [#allocation7], %s29
      %s31 = sshll.u32 [#allocation6], 4
      %s32 = int_to_ptr.vmem [resolvable:$true] %s31
      %37 = dma.hbm_to_vmem [thread:$0]  %s2, 128, %s32, [#allocation7], 16, 16, 1
    $region13: #{tpu_custom_call.1} parent=1 // pred_fallthru
      _
    // Predicated region
    $region14: #{tpu_custom_call.1} parent=1 // pred_check
      _
    $region15: #{tpu_custom_call.1} parent=1 // pred_check_branch
      %39 = sbr.rel (0) target = $region17
    $region16: #{tpu_custom_call.1} parent=1 // pred_region
      %40 = dma.done [#allocation4], 256
    $region17: #{tpu_custom_call.1} parent=1 // pred_fallthru
      _
    // Predicated region
    $region18: #{tpu_custom_call.1} parent=1 // pred_check
      _
    $region19: #{tpu_custom_call.1} parent=1 // pred_check_branch
      %42 = sbr.rel (0) target = $region21
    $region20: #{tpu_custom_call.1} parent=1 // pred_region
      %43 = dma.done [#allocation7], 128
    $region21: #{tpu_custom_call.1} parent=1 // pred_fallthru
      _
    %v44 = vld [vmem:[#allocation3] sm:$0x3]
    %v45 = vld [vmem:[#allocation3 + $0x2] sm:$0x3]
    %v46 = vld [vmem:[#allocation3 + $0x4] sm:$0x3]
    %v47 = vld [vmem:[#allocation3 + $0x6] sm:$0x3]
    %v48 = vld [vmem:[#allocation3 + $0x8] sm:$0x3]
    %v49 = vld [vmem:[#allocation3 + $0xa] sm:$0x3]
    %v50 = vld [vmem:[#allocation3 + $0xc] sm:$0x3]
    %v51 = vld [vmem:[#allocation3 + $0xe] sm:$0x3]
    %v52 = vld [vmem:[#allocation6] sm:$0x1]
    %v53 = vld [vmem:[#allocation6 + $0x1] sm:$0x1]
    %v54 = vld [vmem:[#allocation6 + $0x2] sm:$0x1]
    %v55 = vld [vmem:[#allocation6 + $0x3] sm:$0x1]
    %v56 = vld [vmem:[#allocation6 + $0x4] sm:$0x1]
    %v57 = vld [vmem:[#allocation6 + $0x5] sm:$0x1]
    %v58 = vld [vmem:[#allocation6 + $0x6] sm:$0x1]
    %v59 = vld [vmem:[#allocation6 + $0x7] sm:$0x1]
    %v68 = vlaneseq
    %v69 = vshrl.u32 %v68, 7
    %v70 = vsub.s32 0, %v69
    %v71 = vrot.slane %v52, %v70
    %v72 = vlaneseq
    %v73 = vshrl.u32 %v72, 7
    %v74 = vsub.s32 0, %v73
    %v75 = vrot.slane %v53, %v74
    %v76 = vlaneseq
    %v77 = vshrl.u32 %v76, 7
    %v78 = vsub.s32 0, %v77
    %v79 = vrot.slane %v54, %v78
    %v80 = vlaneseq
    %v81 = vshrl.u32 %v80, 7
    %v82 = vsub.s32 0, %v81
    %v83 = vrot.slane %v55, %v82
    %v84 = vlaneseq
    %v85 = vshrl.u32 %v84, 7
    %v86 = vsub.s32 0, %v85
    %v87 = vrot.slane %v56, %v86
    %v88 = vlaneseq
    %v89 = vshrl.u32 %v88, 7
    %v90 = vsub.s32 0, %v89
    %v91 = vrot.slane %v57, %v90
    %v92 = vlaneseq
    %v93 = vshrl.u32 %v92, 7
    %v94 = vsub.s32 0, %v93
    %v95 = vrot.slane %v58, %v94
    %v96 = vlaneseq
    %v97 = vshrl.u32 %v96, 7
    %v98 = vsub.s32 0, %v97
    %v99 = vrot.slane %v59, %v98
    %v108 = vadd.f32 %v44, %v71
    %v109 = vadd.f32 %v45, %v75
    %v110 = vadd.f32 %v46, %v79
    %v111 = vadd.f32 %v47, %v83
    %v112 = vadd.f32 %v48, %v87
    %v113 = vadd.f32 %v49, %v91
    %v114 = vadd.f32 %v50, %v95
    %v115 = vadd.f32 %v51, %v99
    %vm116 = vcmask 254976
    %117 = vst.msk [vmem:[#allocation8] sm:$0x3] %vm116, %v108
    %118 = vst.msk [vmem:[#allocation8 + $0x2] sm:$0x3] %vm116, %v109
    %119 = vst.msk [vmem:[#allocation8 + $0x4] sm:$0x3] %vm116, %v110
    %120 = vst.msk [vmem:[#allocation8 + $0x6] sm:$0x3] %vm116, %v111
    %121 = vst.msk [vmem:[#allocation8 + $0x8] sm:$0x3] %vm116, %v112
    %122 = vst.msk [vmem:[#allocation8 + $0xa] sm:$0x3] %vm116, %v113
    %123 = vst.msk [vmem:[#allocation8 + $0xc] sm:$0x3] %vm116, %v114
    %124 = vst.msk [vmem:[#allocation8 + $0xe] sm:$0x3] %vm116, %v115
    // Predicated region
    $region22: #{tpu_custom_call.1} parent=1 // pred_check
      _
    $region23: #{tpu_custom_call.1} parent=1 // pred_check_branch
      %126 = sbr.rel (0) target = $region25
    $region24: #{tpu_custom_call.1} parent=1 // pred_region
      %s128 = ssub.s32 256, 256
      %129 = vsyncadd [#allocation5], %s128
      %s130 = sshll.u32 [#allocation8], 4
      %s131 = int_to_ptr.vmem [resolvable:$true] %s130
      %136 = dma.vmem_to_hbm [thread:$0]  %s131, 256, %s3, [#allocation5], 32, 32, 2
    $region25: #{tpu_custom_call.1} parent=1 // pred_fallthru
      _
    // Predicated region
    $region26: #{tpu_custom_call.1} parent=1 // pred_check
      _
    $region27: #{tpu_custom_call.1} parent=1 // pred_check_branch
      %138 = sbr.rel (0) target = $region29
    $region28: #{tpu_custom_call.1} parent=1 // pred_region
      %139 = dma.done [#allocation5], 256
    $region29: #{tpu_custom_call.1} parent=1 // pred_fallthru
      _
    %140 = vsyncpa [#allocation4], 1
    %141 = vsyncpa [#allocation7], 1
    %142 = vsyncpa [#allocation5], 1

</llo_original>
